<compile_context>
chip_gen: v7x
topology: tpu7x:2x2x1
jax: 0.10.0
libtpu: 0.0.40
codegen_flags: <defaults>
</compile_context>

<pallas_src>
import functools

import jax
import jax.numpy as jnp
from jax.experimental import pallas as pl
from jax.experimental.pallas import tpu as pltpu


def _gaussian_kernel(x_ref, w1_ref, b1_ref, w2m_ref, b2m_ref, w2v_ref, b2v_ref,
                     noise_ref, mu_ref, logvar_ref, z_ref):
    hdim = w2m_ref.shape[0]

    # Layer 1: both heads fused along the output axis -> (block_b, 2H), then LeakyReLU.
    x = x_ref[...].astype(w1_ref.dtype)
    h = jnp.dot(x, w1_ref[...], preferred_element_type=jnp.float32) + b1_ref[...]
    h = jnp.maximum(h, 0.1 * h)                        # LeakyReLU(0.1)
    h = h.astype(w2m_ref.dtype)

    # Layer 2: two separate dots (no zero-padded block-diagonal weight).
    # The lane slices land on the H(=128) boundary, so they are free.
    mu = jnp.dot(h[:, :hdim], w2m_ref[...],
                 preferred_element_type=jnp.float32) + b2m_ref[...]
    lv = jnp.dot(h[:, hdim:], w2v_ref[...],
                 preferred_element_type=jnp.float32) + b2v_ref[...]

    # Unconditional clamp == PyTorch's "clamp only if out of range".
    mu = jnp.clip(mu, -100.0, 85.0)
    lv = jnp.tanh(jnp.clip(lv, -100.0, 85.0))
    z = mu + noise_ref[...] * jnp.exp(0.5 * lv)

    mu_ref[...] = mu.astype(mu_ref.dtype)
    logvar_ref[...] = lv.astype(logvar_ref.dtype)
    z_ref[...] = z.astype(z_ref.dtype)


@functools.partial(jax.jit, static_argnames=("block_b",))
def gaussian_forward(x, w1, b1, w2_mu, b2_mu, w2_var, b2_var, noise, *, block_b=None):
    """Fused Gaussian forward. Returns (mu, logvar, z), each float32 of shape (B, Z)."""
    B, D = x.shape
    H, Z = w2_mu.shape
    two_h = w1.shape[1]

    # Single grid step for small batches; cap the tile so very large batches still
    # pipeline comfortably inside the scoped-VMEM defaults on every chip.
    if block_b is None:
        block_b = min(B, 512)
    assert B % block_b == 0, "pad batch to a multiple of block_b (sublane multiple of 8)"
    # NOTE: D, H, Z that are multiples of 128 keep every load/store lane-dense and
    # unmasked; other sizes remain correct but become masked stores.

    flops = 2 * B * (D * two_h + 2 * H * Z) + 8 * B * Z
    transcendentals = 2 * B * Z                        # tanh + exp per latent element
    bytes_accessed = (4 * (x.size + noise.size + 3 * B * Z
                           + b1.size + b2_mu.size + b2_var.size)
                      + 2 * (w1.size + w2_mu.size + w2_var.size))   # bf16 weights

    out_sds = jax.ShapeDtypeStruct((B, Z), jnp.float32)

    mu, logvar, z = pl.pallas_call(
        _gaussian_kernel,
        out_shape=(out_sds, out_sds, out_sds),
        grid=(B // block_b,),
        in_specs=[
            pl.BlockSpec((block_b, D), lambda i: (i, 0)),    # x tile
            pl.BlockSpec((D, two_h), lambda i: (0, 0)),      # [W1_mu | W1_var] (bf16)
            pl.BlockSpec((1, two_h), lambda i: (0, 0)),      # [b1_mu | b1_var]
            pl.BlockSpec((H, Z), lambda i: (0, 0)),          # W2_mu            (bf16)
            pl.BlockSpec((1, Z), lambda i: (0, 0)),          # b2_mu
            pl.BlockSpec((H, Z), lambda i: (0, 0)),          # W2_var           (bf16)
            pl.BlockSpec((1, Z), lambda i: (0, 0)),          # b2_var
            pl.BlockSpec((block_b, Z), lambda i: (i, 0)),    # noise tile
        ],
        out_specs=(
            pl.BlockSpec((block_b, Z), lambda i: (i, 0)),    # mu
            pl.BlockSpec((block_b, Z), lambda i: (i, 0)),    # logvar
            pl.BlockSpec((block_b, Z), lambda i: (i, 0)),    # z
        ),
        compiler_params=pltpu.CompilerParams(
            dimension_semantics=("parallel",)),              # batch tiles independent
        cost_estimate=pl.CostEstimate(flops=flops,
                                      transcendentals=transcendentals,
                                      bytes_accessed=bytes_accessed),
    )(x, w1, b1, w2_mu, b2_mu, w2_var, b2_var, noise)

    return mu, logvar, z


def make_params(key, in_dim, z_dim, weight_dtype=jnp.bfloat16):
    """Deterministic synthetic parameters (uniform, PyTorch-ish scale).

    Returns (raw f32 per-branch params for the reference, fused params for the kernel).
    Weights are pre-transposed (kernel computes x @ W); matmul weights cast to bf16.
    """
    D, H, Z = in_dim, in_dim // 2, z_dim
    ks = jax.random.split(key, 8)
    s1 = 1.0 / jnp.sqrt(D)
    s2 = 1.0 / jnp.sqrt(H)
    raw = {
        "w1_mu": jax.random.uniform(ks[0], (D, H), jnp.float32, -s1, s1),
        "b1_mu": jax.random.uniform(ks[1], (H,), jnp.float32, -s1, s1),
        "w2_mu": jax.random.uniform(ks[2], (H, Z), jnp.float32, -s2, s2),
        "b2_mu": jax.random.uniform(ks[3], (Z,), jnp.float32, -s2, s2),
        "w1_var": jax.random.uniform(ks[4], (D, H), jnp.float32, -s1, s1),
        "b1_var": jax.random.uniform(ks[5], (H,), jnp.float32, -s1, s1),
        "w2_var": jax.random.uniform(ks[6], (H, Z), jnp.float32, -s2, s2),
        "b2_var": jax.random.uniform(ks[7], (Z,), jnp.float32, -s2, s2),
    }
    fused = {
        "w1": jnp.concatenate([raw["w1_mu"], raw["w1_var"]], axis=1).astype(weight_dtype),
        "b1": jnp.concatenate([raw["b1_mu"], raw["b1_var"]])[None, :],     # (1, 2H) f32
        "w2_mu": raw["w2_mu"].astype(weight_dtype),
        "b2_mu": raw["b2_mu"][None, :],
        "w2_var": raw["w2_var"].astype(weight_dtype),
        "b2_var": raw["b2_var"][None, :],
    }
    return raw, fused


def _reference_forward(x, raw, noise, weight_dtype=jnp.float32):
    """Pure-JAX reference mirroring the PyTorch module. With weight_dtype=bfloat16 it
    mirrors the kernel's bf16-weight / f32-accumulate arithmetic (tight check)."""
    cast = lambda a: a.astype(weight_dtype).astype(jnp.float32)
    dot = functools.partial(jnp.dot, precision=jax.lax.Precision.HIGHEST)

    def branch(w1, b1, w2, b2):
        h = dot(cast(x), cast(w1)) + b1
        h = jnp.where(h >= 0, h, 0.1 * h)
        return dot(cast(h), cast(w2)) + b2

    mu = branch(raw["w1_mu"], raw["b1_mu"], raw["w2_mu"], raw["b2_mu"])
    logvar = branch(raw["w1_var"], raw["b1_var"], raw["w2_var"], raw["b2_var"])
    mu = jnp.clip(mu, -100.0, 85.0)
    logvar = jnp.tanh(jnp.clip(logvar, -100.0, 85.0))
    z = mu + noise * jnp.exp(0.5 * logvar)
    return mu, logvar, z


if __name__ == "__main__":
    # Small, hardware-friendly shapes: batch 16 (sublane multiple of 8),
    # in_dim 256 -> hidden 128, z_dim 128 (all lane-aligned).
    B, IN_DIM, Z_DIM = 16, 256, 128

    key = jax.random.PRNGKey(0)
    k_param, k_x, k_noise = jax.random.split(key, 3)
    raw, fused = make_params(k_param, IN_DIM, Z_DIM)
    x = jax.random.normal(k_x, (B, IN_DIM), jnp.float32)
    noise = jax.random.normal(k_noise, (B, Z_DIM), jnp.float32)

    mu, logvar, z = gaussian_forward(
        x, fused["w1"], fused["b1"], fused["w2_mu"], fused["b2_mu"],
        fused["w2_var"], fused["b2_var"], noise)
    mu, logvar, z = jax.block_until_ready((mu, logvar, z))

    assert mu.shape == (B, Z_DIM) and logvar.shape == (B, Z_DIM) and z.shape == (B, Z_DIM)

    # Tight check: reference that mirrors the kernel's bf16-weight arithmetic exactly.
    mu_m, lv_m, z_m = _reference_forward(x, raw, noise, weight_dtype=jnp.bfloat16)
    err_m = max(float(jnp.max(jnp.abs(mu - mu_m))),
                float(jnp.max(jnp.abs(logvar - lv_m))),
                float(jnp.max(jnp.abs(z - z_m))))
    assert err_m < 2e-3, f"bf16-matched max abs error {err_m}"

    # Semantic check: full-f32 reference (loose tolerance accounts for bf16 weights).
    mu_r, lv_r, z_r = _reference_forward(x, raw, noise, weight_dtype=jnp.float32)
    err_r = max(float(jnp.max(jnp.abs(mu - mu_r))),
                float(jnp.max(jnp.abs(logvar - lv_r))),
                float(jnp.max(jnp.abs(z - z_r))))
    assert err_r < 1e-1, f"f32-reference max abs error {err_r}"

    print("KERNEL_OK")
</pallas_src>

<mosaic_0001>
module attributes {stable_mosaic.version = 11 : i64} {
  func.func @_gaussian_kernel(%arg0: i32, %arg1: memref<16x256xf32, #tpu.memory_space<vmem>>, %arg2: memref<256x256xbf16, #tpu.memory_space<vmem>>, %arg3: memref<1x256xf32, #tpu.memory_space<vmem>>, %arg4: memref<128x128xbf16, #tpu.memory_space<vmem>>, %arg5: memref<1x128xf32, #tpu.memory_space<vmem>>, %arg6: memref<128x128xbf16, #tpu.memory_space<vmem>>, %arg7: memref<1x128xf32, #tpu.memory_space<vmem>>, %arg8: memref<16x128xf32, #tpu.memory_space<vmem>>, %arg9: memref<16x128xf32, #tpu.memory_space<vmem>>, %arg10: memref<16x128xf32, #tpu.memory_space<vmem>>, %arg11: memref<16x128xf32, #tpu.memory_space<vmem>>) attributes {dimension_semantics = [#tpu.dimension_semantics<parallel>], iteration_bounds = array<i64: 1>, scalar_prefetch = 0 : i64, scratch_operands = 0 : i64, tpu.core_type = #tpu.core_type<tc>, window_params = [{transform_indices = @transform_0, window_bounds = array<i64: 16, 256>}, {pipeline_mode = #tpu.pipeline_mode<synchronous>, transform_indices = @transform_1, window_bounds = array<i64: 256, 256>}, {pipeline_mode = #tpu.pipeline_mode<synchronous>, transform_indices = @transform_2, window_bounds = array<i64: 1, 256>}, {pipeline_mode = #tpu.pipeline_mode<synchronous>, transform_indices = @transform_3, window_bounds = array<i64: 128, 128>}, {pipeline_mode = #tpu.pipeline_mode<synchronous>, transform_indices = @transform_4, window_bounds = array<i64: 1, 128>}, {pipeline_mode = #tpu.pipeline_mode<synchronous>, transform_indices = @transform_5, window_bounds = array<i64: 128, 128>}, {pipeline_mode = #tpu.pipeline_mode<synchronous>, transform_indices = @transform_6, window_bounds = array<i64: 1, 128>}, {transform_indices = @transform_7, window_bounds = array<i64: 16, 128>}, {transform_indices = @transform_8, window_bounds = array<i64: 16, 128>}, {transform_indices = @transform_9, window_bounds = array<i64: 16, 128>}, {transform_indices = @transform_10, window_bounds = array<i64: 16, 128>}]} {
    %c0 = arith.constant 0 : index
    %c0_0 = arith.constant 0 : index
    %0 = vector.load %arg1[%c0, %c0_0] : memref<16x256xf32, #tpu.memory_space<vmem>>, vector<16x256xf32>
    %1 = arith.truncf %0 : vector<16x256xf32> to vector<16x256xbf16>
    %c0_1 = arith.constant 0 : index
    %c0_2 = arith.constant 0 : index
    %2 = vector.load %arg2[%c0_1, %c0_2] : memref<256x256xbf16, #tpu.memory_space<vmem>>, vector<256x256xbf16>
    %cst = arith.constant dense<0.000000e+00> : vector<16x256xf32>
    %3 = tpu.matmul %1, %2, %cst {dimension_numbers = #tpu.dot_dimension_numbers<[1], [0], [0], [1], [0, 0, 1, 1], [], []>} : vector<16x256xbf16>, vector<256x256xbf16>, vector<16x256xf32> -> vector<16x256xf32>
    %c0_3 = arith.constant 0 : index
    %c0_4 = arith.constant 0 : index
    %4 = vector.load %arg3[%c0_3, %c0_4] : memref<1x256xf32, #tpu.memory_space<vmem>>, vector<1x256xf32>
    %5 = vector.broadcast %4 : vector<1x256xf32> to vector<16x256xf32>
    %6 = arith.addf %3, %5 : vector<16x256xf32>
    %cst_5 = arith.constant 1.000000e-01 : f32
    %7 = vector.broadcast %cst_5 : f32 to vector<16x256xf32>
    %8 = arith.mulf %7, %6 : vector<16x256xf32>
    %9 = arith.maximumf %6, %8 : vector<16x256xf32>
    %10 = arith.truncf %9 : vector<16x256xf32> to vector<16x256xbf16>
    %11 = vector.extract_strided_slice %10 {offsets = [0, 0], sizes = [16, 128], strides = [1, 1]} : vector<16x256xbf16> to vector<16x128xbf16>
    %c0_6 = arith.constant 0 : index
    %c0_7 = arith.constant 0 : index
    %12 = vector.load %arg4[%c0_6, %c0_7] : memref<128x128xbf16, #tpu.memory_space<vmem>>, vector<128x128xbf16>
    %cst_8 = arith.constant dense<0.000000e+00> : vector<16x128xf32>
    %13 = tpu.matmul %11, %12, %cst_8 {dimension_numbers = #tpu.dot_dimension_numbers<[1], [0], [0], [1], [0, 0, 1, 1], [], []>} : vector<16x128xbf16>, vector<128x128xbf16>, vector<16x128xf32> -> vector<16x128xf32>
    %c0_9 = arith.constant 0 : index
    %c0_10 = arith.constant 0 : index
    %14 = vector.load %arg5[%c0_9, %c0_10] : memref<1x128xf32, #tpu.memory_space<vmem>>, vector<1x128xf32>
    %15 = vector.broadcast %14 : vector<1x128xf32> to vector<16x128xf32>
    %16 = arith.addf %13, %15 : vector<16x128xf32>
    %17 = vector.extract_strided_slice %10 {offsets = [0, 128], sizes = [16, 128], strides = [1, 1]} : vector<16x256xbf16> to vector<16x128xbf16>
    %c0_11 = arith.constant 0 : index
    %c0_12 = arith.constant 0 : index
    %18 = vector.load %arg6[%c0_11, %c0_12] : memref<128x128xbf16, #tpu.memory_space<vmem>>, vector<128x128xbf16>
    %cst_13 = arith.constant dense<0.000000e+00> : vector<16x128xf32>
    %19 = tpu.matmul %17, %18, %cst_13 {dimension_numbers = #tpu.dot_dimension_numbers<[1], [0], [0], [1], [0, 0, 1, 1], [], []>} : vector<16x128xbf16>, vector<128x128xbf16>, vector<16x128xf32> -> vector<16x128xf32>
    %c0_14 = arith.constant 0 : index
    %c0_15 = arith.constant 0 : index
    %20 = vector.load %arg7[%c0_14, %c0_15] : memref<1x128xf32, #tpu.memory_space<vmem>>, vector<1x128xf32>
    %21 = vector.broadcast %20 : vector<1x128xf32> to vector<16x128xf32>
    %22 = arith.addf %19, %21 : vector<16x128xf32>
    %cst_16 = arith.constant -1.000000e+02 : f32
    %cst_17 = arith.constant 8.500000e+01 : f32
    %23 = vector.broadcast %cst_16 : f32 to vector<16x128xf32>
    %24 = arith.maximumf %23, %16 : vector<16x128xf32>
    %25 = vector.broadcast %cst_17 : f32 to vector<16x128xf32>
    %26 = arith.minimumf %25, %24 : vector<16x128xf32>
    %cst_18 = arith.constant -1.000000e+02 : f32
    %cst_19 = arith.constant 8.500000e+01 : f32
    %27 = vector.broadcast %cst_18 : f32 to vector<16x128xf32>
    %28 = arith.maximumf %27, %22 : vector<16x128xf32>
    %29 = vector.broadcast %cst_19 : f32 to vector<16x128xf32>
    %30 = arith.minimumf %29, %28 : vector<16x128xf32>
    %31 = math.tanh %30 : vector<16x128xf32>
    %c0_20 = arith.constant 0 : index
    %c0_21 = arith.constant 0 : index
    %32 = vector.load %arg8[%c0_20, %c0_21] : memref<16x128xf32, #tpu.memory_space<vmem>>, vector<16x128xf32>
    %cst_22 = arith.constant 5.000000e-01 : f32
    %33 = vector.broadcast %cst_22 : f32 to vector<16x128xf32>
    %34 = arith.mulf %33, %31 : vector<16x128xf32>
    %35 = math.exp %34 : vector<16x128xf32>
    %36 = arith.mulf %32, %35 : vector<16x128xf32>
    %37 = arith.addf %26, %36 : vector<16x128xf32>
    %c0_23 = arith.constant 0 : index
    %c0_24 = arith.constant 0 : index
    %38 = vector.load %arg9[%c0_23, %c0_24] : memref<16x128xf32, #tpu.memory_space<vmem>>, vector<16x128xf32>
    tpu.vector_store %arg9[%c0_23, %c0_24], %26 {strides = array<i32>} : memref<16x128xf32, #tpu.memory_space<vmem>>, vector<16x128xf32>,
    %c0_25 = arith.constant 0 : index
    %c0_26 = arith.constant 0 : index
    %39 = vector.load %arg10[%c0_25, %c0_26] : memref<16x128xf32, #tpu.memory_space<vmem>>, vector<16x128xf32>
    tpu.vector_store %arg10[%c0_25, %c0_26], %31 {strides = array<i32>} : memref<16x128xf32, #tpu.memory_space<vmem>>, vector<16x128xf32>,
    %c0_27 = arith.constant 0 : index
    %c0_28 = arith.constant 0 : index
    %40 = vector.load %arg11[%c0_27, %c0_28] : memref<16x128xf32, #tpu.memory_space<vmem>>, vector<16x128xf32>
    tpu.vector_store %arg11[%c0_27, %c0_28], %37 {strides = array<i32>} : memref<16x128xf32, #tpu.memory_space<vmem>>, vector<16x128xf32>,
    return
  }
  func.func @transform_0(%arg0: i32) -> (i32, i32) {
    %c0_i32 = arith.constant 0 : i32
    %c0_i32_0 = arith.constant 0 : i32
    return %arg0, %c0_i32 : i32, i32
  }
  func.func @transform_1(%arg0: i32) -> (i32, i32) {
    %c0_i32 = arith.constant 0 : i32
    %c0_i32_0 = arith.constant 0 : i32
    %c0_i32_1 = arith.constant 0 : i32
    return %c0_i32, %c0_i32_0 : i32, i32
  }
  func.func @transform_2(%arg0: i32) -> (i32, i32) {
    %c0_i32 = arith.constant 0 : i32
    %c0_i32_0 = arith.constant 0 : i32
    %c0_i32_1 = arith.constant 0 : i32
    return %c0_i32, %c0_i32_0 : i32, i32
  }
  func.func @transform_3(%arg0: i32) -> (i32, i32) {
    %c0_i32 = arith.constant 0 : i32
    %c0_i32_0 = arith.constant 0 : i32
    %c0_i32_1 = arith.constant 0 : i32
    return %c0_i32, %c0_i32_0 : i32, i32
  }
  func.func @transform_4(%arg0: i32) -> (i32, i32) {
    %c0_i32 = arith.constant 0 : i32
    %c0_i32_0 = arith.constant 0 : i32
    %c0_i32_1 = arith.constant 0 : i32
    return %c0_i32, %c0_i32_0 : i32, i32
  }
  func.func @transform_5(%arg0: i32) -> (i32, i32) {
    %c0_i32 = arith.constant 0 : i32
    %c0_i32_0 = arith.constant 0 : i32
    %c0_i32_1 = arith.constant 0 : i32
    return %c0_i32, %c0_i32_0 : i32, i32
  }
  func.func @transform_6(%arg0: i32) -> (i32, i32) {
    %c0_i32 = arith.constant 0 : i32
    %c0_i32_0 = arith.constant 0 : i32
    %c0_i32_1 = arith.constant 0 : i32
    return %c0_i32, %c0_i32_0 : i32, i32
  }
  func.func @transform_7(%arg0: i32) -> (i32, i32) {
    %c0_i32 = arith.constant 0 : i32
    %c0_i32_0 = arith.constant 0 : i32
    return %arg0, %c0_i32 : i32, i32
  }
  func.func @transform_8(%arg0: i32) -> (i32, i32) {
    %c0_i32 = arith.constant 0 : i32
    %c0_i32_0 = arith.constant 0 : i32
    return %arg0, %c0_i32 : i32, i32
  }
  func.func @transform_9(%arg0: i32) -> (i32, i32) {
    %c0_i32 = arith.constant 0 : i32
    %c0_i32_0 = arith.constant 0 : i32
    return %arg0, %c0_i32 : i32, i32
  }
  func.func @transform_10(%arg0: i32) -> (i32, i32) {
    %c0_i32 = arith.constant 0 : i32
    %c0_i32_0 = arith.constant 0 : i32
    return %arg0, %c0_i32 : i32, i32
  }
}

</mosaic_0001>

<llo_original>
// kernel: gaussian_forward.1
$region0: #{gaussian_forward.1}
  #allocation0 [shape = 'u32[]', space=smem, size = 0x4, offset = 0x4, fixed_abs, tag = 'smem constant byte address 0x4 - core index']
  #allocation1 [shape = 'u32[144,128]{1,0:T(1,128)}', space=vmem, size = 0x12000, scoped, tag = 'internal scratch']
  %s0 = inlined_call_operand.hbm [shape: f32[16,256], index: 0, kind: input, shape index: {}]
  %s1 = inlined_call_operand.hbm [shape: bf16[256,256], index: 1, kind: input, shape index: {}]
  %s2 = inlined_call_operand.vmem [shape: f32[1,256], index: 2, kind: input, shape index: {}]
  %s3 = inlined_call_operand.hbm [shape: bf16[128,128], index: 3, kind: input, shape index: {}]
  %s4 = inlined_call_operand.vmem [shape: f32[1,128], index: 4, kind: input, shape index: {}]
  %s5 = inlined_call_operand.hbm [shape: bf16[128,128], index: 5, kind: input, shape index: {}]
  %s6 = inlined_call_operand.vmem [shape: f32[1,128], index: 6, kind: input, shape index: {}]
  %s7 = inlined_call_operand.vmem [shape: f32[16,128], index: 7, kind: input, shape index: {}]
  %s8 = inlined_call_operand.hbm [shape: f32[16,128], index: 8, kind: output, shape index: {0}]
  %s9 = inlined_call_operand.hbm [shape: f32[16,128], index: 9, kind: output, shape index: {1}]
  %s10 = inlined_call_operand.hbm [shape: f32[16,128], index: 10, kind: output, shape index: {2}]
  %11 = xla_tuple %s8, %s9, %s10
  %s12 = sld [smem:[#allocation0]]
  $region74: #{gaussian_forward.1} parent=0
    _
  %s14 = ssub.s32 1, %s12
  %s15 = scalar_select 0, %s14, %s12
  $region1: #{gaussian_forward.1} parent=0
    #allocation2 [shape = 'u8[16384]{0}', space=vmem, size = 0x4000, scoped, tag = 'input window, operand 0, single buffered']
    #allocation3 [shape = 's32[1]{0}', space=sflag, size = 0x4, scoped, tag = 'scoped memory for gaussian_forward.1']
    #allocation4 [shape = 's32[1]{0}', space=sflag, size = 0x4, scoped, tag = 'scoped memory for gaussian_forward.1']
    #allocation5 [shape = 'u8[131072]{0}', space=vmem, size = 0x20000, scoped, tag = 'input window, operand 1, single buffered']
    #allocation6 [shape = 's32[1]{0}', space=sflag, size = 0x4, scoped, tag = 'scoped memory for gaussian_forward.1']
    #allocation7 [shape = 'u8[32768]{0}', space=vmem, size = 0x8000, scoped, tag = 'input window, operand 3, single buffered']
    #allocation8 [shape = 'u8[32768]{0}', space=vmem, size = 0x8000, scoped, tag = 'input window, operand 5, single buffered']
    #allocation9 [shape = 's32[1]{0}', space=sflag, size = 0x4, scoped, tag = 'scoped memory for gaussian_forward.1']
    #allocation10 [shape = 'u8[8192]{0}', space=vmem, size = 0x2000, scoped, tag = 'output window, operand 0, single buffered']
    #allocation11 [shape = 'u8[8192]{0}', space=vmem, size = 0x2000, scoped, tag = 'output window, operand 1, single buffered']
    #allocation12 [shape = 's32[1]{0}', space=sflag, size = 0x4, scoped, tag = 'scoped memory for gaussian_forward.1']
    #allocation13 [shape = 'u8[8192]{0}', space=vmem, size = 0x2000, scoped, tag = 'output window, operand 2, single buffered']
    %16 = vsyncpa [#allocation3], 0
    %17 = vsyncpa [#allocation6], 0
    %18 = vsyncpa [#allocation9], 0
    %19 = vsyncpa [#allocation4], 0
    %20 = vsyncpa [#allocation12], 0
    // Predicated region
    $region2: #{gaussian_forward.1} parent=1 // pred_check
      _
    $region3: #{gaussian_forward.1} parent=1 // pred_check_branch
      %22 = sbr.rel (0) target = $region5
    $region4: #{gaussian_forward.1} parent=1 // pred_region
      %s24 = ssub.s32 512, 512
      %25 = vsyncadd [#allocation3], %s24
      %s26 = sshll.u32 [#allocation2], 4
      %s27 = int_to_ptr.vmem [resolvable:$true] %s26
      %32 = dma.hbm_to_vmem [thread:$0]  %s0, 512, %s27, [#allocation3], 256, 256, 16
    $region5: #{gaussian_forward.1} parent=1 // pred_fallthru
      _
    // Predicated region
    $region6: #{gaussian_forward.1} parent=1 // pred_check
      _
    $region7: #{gaussian_forward.1} parent=1 // pred_check_branch
      %34 = sbr.rel (0) target = $region9
    $region8: #{gaussian_forward.1} parent=1 // pred_region
      %s36 = ssub.s32 4096, 4096
      %37 = vsyncadd [#allocation6], %s36
      %s38 = sshll.u32 [#allocation5], 4
      %s39 = int_to_ptr.vmem [resolvable:$true] %s38
      %44 = dma.hbm_to_vmem [thread:$0]  %s1, 4096, %s39, [#allocation6], 128, 128, 8
    $region9: #{gaussian_forward.1} parent=1 // pred_fallthru
      _
    // Predicated region
    $region10: #{gaussian_forward.1} parent=1 // pred_check
      _
    $region11: #{gaussian_forward.1} parent=1 // pred_check_branch
      %46 = sbr.rel (0) target = $region13
    $region12: #{gaussian_forward.1} parent=1 // pred_region
      _
    $region13: #{gaussian_forward.1} parent=1 // pred_fallthru
      _
    // Predicated region
    $region14: #{gaussian_forward.1} parent=1 // pred_check
      _
    $region15: #{gaussian_forward.1} parent=1 // pred_check_branch
      %48 = sbr.rel (0) target = $region17
    $region16: #{gaussian_forward.1} parent=1 // pred_region
      %s50 = ssub.s32 1024, 1024
      %51 = vsyncadd [#allocation6], %s50
      %s52 = sshll.u32 [#allocation7], 4
      %s53 = int_to_ptr.vmem [resolvable:$true] %s52
      %58 = dma.hbm_to_vmem [thread:$0]  %s3, 1024, %s53, [#allocation6], 64, 64, 4
    $region17: #{gaussian_forward.1} parent=1 // pred_fallthru
      _
    // Predicated region
    $region18: #{gaussian_forward.1} parent=1 // pred_check
      _
    $region19: #{gaussian_forward.1} parent=1 // pred_check_branch
      %60 = sbr.rel (0) target = $region21
    $region20: #{gaussian_forward.1} parent=1 // pred_region
      _
    $region21: #{gaussian_forward.1} parent=1 // pred_fallthru
      _
    // Predicated region
    $region22: #{gaussian_forward.1} parent=1 // pred_check
      _
    $region23: #{gaussian_forward.1} parent=1 // pred_check_branch
      %62 = sbr.rel (0) target = $region25
    $region24: #{gaussian_forward.1} parent=1 // pred_region
      %s64 = ssub.s32 1024, 1024
      %65 = vsyncadd [#allocation9], %s64
      %s66 = sshll.u32 [#allocation8], 4
      %s67 = int_to_ptr.vmem [resolvable:$true] %s66
      %72 = dma.hbm_to_vmem [thread:$0]  %s5, 1024, %s67, [#allocation9], 64, 64, 4
    $region25: #{gaussian_forward.1} parent=1 // pred_fallthru
      _
    // Predicated region
    $region26: #{gaussian_forward.1} parent=1 // pred_check
      _
    $region27: #{gaussian_forward.1} parent=1 // pred_check_branch
      %74 = sbr.rel (0) target = $region29
    $region28: #{gaussian_forward.1} parent=1 // pred_region
      _
    $region29: #{gaussian_forward.1} parent=1 // pred_fallthru
      _
    // Predicated region
    $region30: #{gaussian_forward.1} parent=1 // pred_check
      _
    $region31: #{gaussian_forward.1} parent=1 // pred_check_branch
      %76 = sbr.rel (0) target = $region33
    $region32: #{gaussian_forward.1} parent=1 // pred_region
      _
    $region33: #{gaussian_forward.1} parent=1 // pred_fallthru
      _
    // Predicated region
    $region34: #{gaussian_forward.1} parent=1 // pred_check
      _
    $region35: #{gaussian_forward.1} parent=1 // pred_check_branch
      %78 = sbr.rel (0) target = $region37
    $region36: #{gaussian_forward.1} parent=1 // pred_region
      %79 = dma.done [#allocation3], 512
    $region37: #{gaussian_forward.1} parent=1 // pred_fallthru
      _
    // Predicated region
    $region38: #{gaussian_forward.1} parent=1 // pred_check
      _
    $region39: #{gaussian_forward.1} parent=1 // pred_check_branch
      %81 = sbr.rel (0) target = $region41
    $region40: #{gaussian_forward.1} parent=1 // pred_region
      %82 = dma.done [#allocation6], 4096
    $region41: #{gaussian_forward.1} parent=1 // pred_fallthru
      _
    // Predicated region
    $region42: #{gaussian_forward.1} parent=1 // pred_check
      _
    $region43: #{gaussian_forward.1} parent=1 // pred_check_branch
      %84 = sbr.rel (0) target = $region45
    $region44: #{gaussian_forward.1} parent=1 // pred_region
      %85 = dma.done [#allocation6], 1024
    $region45: #{gaussian_forward.1} parent=1 // pred_fallthru
      _
    // Predicated region
    $region46: #{gaussian_forward.1} parent=1 // pred_check
      _
    $region47: #{gaussian_forward.1} parent=1 // pred_check_branch
      %87 = sbr.rel (0) target = $region49
    $region48: #{gaussian_forward.1} parent=1 // pred_region
      %88 = dma.done [#allocation9], 1024
    $region49: #{gaussian_forward.1} parent=1 // pred_fallthru
      _
    %v90 = vld [vmem:[#allocation2] sm:$0xff]
    %v91 = vld [vmem:[#allocation2 + $0x8] sm:$0xff]
    %v92 = vld [vmem:[#allocation2 + $0x10] sm:$0xff]
    %v93 = vld [vmem:[#allocation2 + $0x18] sm:$0xff]
    %v94 = vpack.c.bf16 %v92, %v90
    %v95 = vpack.c.bf16 %v93, %v91
    %v96 = vld [vmem:[#allocation5] sm:$0xff]
    %v97 = vld [vmem:[#allocation5 + $0x8] sm:$0xff]
    %v98 = vld [vmem:[#allocation5 + $0x10] sm:$0xff]
    %v99 = vld [vmem:[#allocation5 + $0x18] sm:$0xff]
    %v100 = vld [vmem:[#allocation5 + $0x20] sm:$0xff]
    %v101 = vld [vmem:[#allocation5 + $0x28] sm:$0xff]
    %v102 = vld [vmem:[#allocation5 + $0x30] sm:$0xff]
    %v103 = vld [vmem:[#allocation5 + $0x38] sm:$0xff]
    %v104 = vld [vmem:[#allocation5 + $0x40] sm:$0xff]
    %v105 = vld [vmem:[#allocation5 + $0x48] sm:$0xff]
    %v106 = vld [vmem:[#allocation5 + $0x50] sm:$0xff]
    %v107 = vld [vmem:[#allocation5 + $0x58] sm:$0xff]
    %v108 = vld [vmem:[#allocation5 + $0x60] sm:$0xff]
    %v109 = vld [vmem:[#allocation5 + $0x68] sm:$0xff]
    %v110 = vld [vmem:[#allocation5 + $0x70] sm:$0xff]
    %v111 = vld [vmem:[#allocation5 + $0x78] sm:$0xff]
    %v112 = vld [vmem:[#allocation5 + $0x80] sm:$0xff]
    %v113 = vld [vmem:[#allocation5 + $0x88] sm:$0xff]
    %v114 = vld [vmem:[#allocation5 + $0x90] sm:$0xff]
    %v115 = vld [vmem:[#allocation5 + $0x98] sm:$0xff]
    %v116 = vld [vmem:[#allocation5 + $0xa0] sm:$0xff]
    %v117 = vld [vmem:[#allocation5 + $0xa8] sm:$0xff]
    %v118 = vld [vmem:[#allocation5 + $0xb0] sm:$0xff]
    %v119 = vld [vmem:[#allocation5 + $0xb8] sm:$0xff]
    %v120 = vld [vmem:[#allocation5 + $0xc0] sm:$0xff]
    %v121 = vld [vmem:[#allocation5 + $0xc8] sm:$0xff]
    %v122 = vld [vmem:[#allocation5 + $0xd0] sm:$0xff]
    %v123 = vld [vmem:[#allocation5 + $0xd8] sm:$0xff]
    %v124 = vld [vmem:[#allocation5 + $0xe0] sm:$0xff]
    %v125 = vld [vmem:[#allocation5 + $0xe8] sm:$0xff]
    %v126 = vld [vmem:[#allocation5 + $0xf0] sm:$0xff]
    %v127 = vld [vmem:[#allocation5 + $0xf8] sm:$0xff]
    %v128 = vld [vmem:[%s2] sm:$0x3]
    %v130 = vlaneseq
    %v131 = vshrl.u32 %v130, 7
    %v132 = vsub.s32 0, %v131
    %v133 = vrot.slane %v128, %v132
    %v134 = vlaneseq
    %v135 = vshrl.u32 %v134, 7
    %v136 = vsub.s32 1, %v135
    %v137 = vrot.slane %v128, %v136
    %v172 = vunpack.c.l.b16 %v96
    %v173 = vunpack.c.h.b16 %v96
    %v174 = vunpack.c.l.b16 %v97
    %v175 = vunpack.c.h.b16 %v97
    %v176 = vunpack.c.l.b16 %v98
    %v177 = vunpack.c.h.b16 %v98
    %v178 = vunpack.c.l.b16 %v99
    %v179 = vunpack.c.h.b16 %v99
    %v180 = vunpack.c.l.b16 %v100
    %v181 = vunpack.c.h.b16 %v100
    %v182 = vunpack.c.l.b16 %v101
    %v183 = vunpack.c.h.b16 %v101
    %v184 = vunpack.c.l.b16 %v102
    %v185 = vunpack.c.h.b16 %v102
    %v186 = vunpack.c.l.b16 %v103
    %v187 = vunpack.c.h.b16 %v103
    %v188 = vunpack.c.l.b16 %v104
    %v189 = vunpack.c.h.b16 %v104
    %v190 = vunpack.c.l.b16 %v105
    %v191 = vunpack.c.h.b16 %v105
    %v192 = vunpack.c.l.b16 %v106
    %v193 = vunpack.c.h.b16 %v106
    %v194 = vunpack.c.l.b16 %v107
    %v195 = vunpack.c.h.b16 %v107
    %v196 = vunpack.c.l.b16 %v108
    %v197 = vunpack.c.h.b16 %v108
    %v198 = vunpack.c.l.b16 %v109
    %v199 = vunpack.c.h.b16 %v109
    %v200 = vunpack.c.l.b16 %v110
    %v201 = vunpack.c.h.b16 %v110
    %v202 = vunpack.c.l.b16 %v111
    %v203 = vunpack.c.h.b16 %v111
    %v204 = vunpack.c.l.b16 %v112
    %v205 = vunpack.c.h.b16 %v112
    %v206 = vunpack.c.l.b16 %v113
    %v207 = vunpack.c.h.b16 %v113
    %v208 = vunpack.c.l.b16 %v114
    %v209 = vunpack.c.h.b16 %v114
    %v210 = vunpack.c.l.b16 %v115
    %v211 = vunpack.c.h.b16 %v115
    %v212 = vunpack.c.l.b16 %v116
    %v213 = vunpack.c.h.b16 %v116
    %v214 = vunpack.c.l.b16 %v117
    %v215 = vunpack.c.h.b16 %v117
    %v216 = vunpack.c.l.b16 %v118
    %v217 = vunpack.c.h.b16 %v118
    %v218 = vunpack.c.l.b16 %v119
    %v219 = vunpack.c.h.b16 %v119
    %v220 = vunpack.c.l.b16 %v120
    %v221 = vunpack.c.h.b16 %v120
    %v222 = vunpack.c.l.b16 %v121
    %v223 = vunpack.c.h.b16 %v121
    %v224 = vunpack.c.l.b16 %v122
    %v225 = vunpack.c.h.b16 %v122
    %v226 = vunpack.c.l.b16 %v123
    %v227 = vunpack.c.h.b16 %v123
    %v228 = vunpack.c.l.b16 %v124
    %v229 = vunpack.c.h.b16 %v124
    %v230 = vunpack.c.l.b16 %v125
    %v231 = vunpack.c.h.b16 %v125
    %v232 = vunpack.c.l.b16 %v126
    %v233 = vunpack.c.h.b16 %v126
    %v234 = vunpack.c.l.b16 %v127
    %v235 = vunpack.c.h.b16 %v127
    %v236 = vpack.c.b16 %v174, %v172
    %v237 = vpack.c.b16 %v175, %v173
    %v238 = vpack.c.b16 %v178, %v176
    %v239 = vpack.c.b16 %v179, %v177
    %v240 = vpack.c.b16 %v182, %v180
    %v241 = vpack.c.b16 %v183, %v181
    %v242 = vpack.c.b16 %v186, %v184
    %v243 = vpack.c.b16 %v187, %v185
    %v244 = vpack.c.b16 %v190, %v188
    %v245 = vpack.c.b16 %v191, %v189
    %v246 = vpack.c.b16 %v194, %v192
    %v247 = vpack.c.b16 %v195, %v193
    %v248 = vpack.c.b16 %v198, %v196
    %v249 = vpack.c.b16 %v199, %v197
    %v250 = vpack.c.b16 %v202, %v200
    %v251 = vpack.c.b16 %v203, %v201
    %v252 = vpack.c.b16 %v206, %v204
    %v253 = vpack.c.b16 %v207, %v205
    %v254 = vpack.c.b16 %v210, %v208
    %v255 = vpack.c.b16 %v211, %v209
    %v256 = vpack.c.b16 %v214, %v212
    %v257 = vpack.c.b16 %v215, %v213
    %v258 = vpack.c.b16 %v218, %v216
    %v259 = vpack.c.b16 %v219, %v217
    %v260 = vpack.c.b16 %v222, %v220
    %v261 = vpack.c.b16 %v223, %v221
    %v262 = vpack.c.b16 %v226, %v224
    %v263 = vpack.c.b16 %v227, %v225
    %v264 = vpack.c.b16 %v230, %v228
    %v265 = vpack.c.b16 %v231, %v229
    %v266 = vpack.c.b16 %v234, %v232
    %v267 = vpack.c.b16 %v235, %v233
    %300 = vmatprep.subr.bf16.mxu0 %v237
    %301 = vmatpush1.bf16.msra.mxu0 %v236
    %302 = vmatprep.subr.bf16.mxu0 %v239
    %303 = vmatpush1.bf16.msra.mxu0 %v238
    %304 = vmatprep.subr.bf16.mxu0 %v241
    %305 = vmatpush1.bf16.msra.mxu0 %v240
    %306 = vmatprep.subr.bf16.mxu0 %v243
    %307 = vmatpush1.bf16.msra.mxu0 %v242
    %308 = vmatprep.subr.bf16.mxu0 %v245
    %309 = vmatpush1.bf16.msra.mxu0 %v244
    %310 = vmatprep.subr.bf16.mxu0 %v247
    %311 = vmatpush1.bf16.msra.mxu0 %v246
    %312 = vmatprep.subr.bf16.mxu0 %v249
    %313 = vmatpush1.bf16.msra.mxu0 %v248
    %314 = vmatprep.subr.bf16.mxu0 %v251
    %315 = vmatpush1.bf16.msra.mxu0 %v250
    %316 = vmatprep.subr.bf16.mxu0 %v253
    %317 = vmatpush1.bf16.msra.mxu0 %v252
    %318 = vmatprep.subr.bf16.mxu0 %v255
    %319 = vmatpush1.bf16.msra.mxu0 %v254
    %320 = vmatprep.subr.bf16.mxu0 %v257
    %321 = vmatpush1.bf16.msra.mxu0 %v256
    %322 = vmatprep.subr.bf16.mxu0 %v259
    %323 = vmatpush1.bf16.msra.mxu0 %v258
    %324 = vmatprep.subr.bf16.mxu0 %v261
    %325 = vmatpush1.bf16.msra.mxu0 %v260
    %326 = vmatprep.subr.bf16.mxu0 %v263
    %327 = vmatpush1.bf16.msra.mxu0 %v262
    %328 = vmatprep.subr.bf16.mxu0 %v265
    %329 = vmatpush1.bf16.msra.mxu0 %v264
    %330 = vmatprep.subr.bf16.mxu0 %v267
    %331 = vmatpush1.bf16.msra.mxu0 %v266
    %332 = vmatprep.mubr.bf16.mxu0 %v95
    %333 = vmatmul.mubr.bf16.gmra.mrb[0].mxu0 %v94
    %v334 = vpop.f32.mrb[0].mxu0
    %v335 = vadd.f32 %v133, %v334
    %v336 = vpop.f32.mrb[0].mxu0
    %v337 = vadd.f32 %v137, %v336
    %v338 = vpop.f32.mrb[0].mxu0
    %v339 = vadd.f32 %v133, %v338
    %v340 = vpop.f32.mrb[0].mxu0
    %v341 = vadd.f32 %v137, %v340
    %342 = vdwg.mxu0
    %v343 = vmul.f32 %v335, 0.1
    %v344 = vmul.f32 %v337, 0.1
    %v345 = vmul.f32 %v339, 0.1
    %v346 = vmul.f32 %v341, 0.1
    %v347 = vmax.f32 %v335, %v343
    %v348 = vmax.f32 %v337, %v344
    %v349 = vmax.f32 %v339, %v345
    %v350 = vmax.f32 %v341, %v346
    %v351 = vpack.c.bf16 %v349, %v347
    %v352 = vpack.c.bf16 %v350, %v348
    %v353 = vld [vmem:[#allocation7] sm:$0xf]
    %v354 = vld [vmem:[#allocation7 + $0x4] sm:$0xf]
    %v355 = vld [vmem:[#allocation7 + $0x8] sm:$0xf]
    %v356 = vld [vmem:[#allocation7 + $0xc] sm:$0xf]
    %v357 = vld [vmem:[#allocation7 + $0x10] sm:$0xf]
    %v358 = vld [vmem:[#allocation7 + $0x14] sm:$0xf]
    %v359 = vld [vmem:[#allocation7 + $0x18] sm:$0xf]
    %v360 = vld [vmem:[#allocation7 + $0x1c] sm:$0xf]
    %v361 = vld [vmem:[#allocation7 + $0x20] sm:$0xf]
    %v362 = vld [vmem:[#allocation7 + $0x24] sm:$0xf]
    %v363 = vld [vmem:[#allocation7 + $0x28] sm:$0xf]
    %v364 = vld [vmem:[#allocation7 + $0x2c] sm:$0xf]
    %v365 = vld [vmem:[#allocation7 + $0x30] sm:$0xf]
    %v366 = vld [vmem:[#allocation7 + $0x34] sm:$0xf]
    %v367 = vld [vmem:[#allocation7 + $0x38] sm:$0xf]
    %v368 = vld [vmem:[#allocation7 + $0x3c] sm:$0xf]
    %v369 = vld [vmem:[%s4] sm:$0x1]
    %v371 = vlaneseq
    %v372 = vshrl.u32 %v371, 7
    %v373 = vsub.s32 0, %v372
    %v374 = vrot.slane %v369, %v373
    %v392 = vunpack.c.l.b16 %v353
    %v393 = vunpack.c.l.b16 %v354
    %v394 = vunpack.c.l.b16 %v355
    %v395 = vunpack.c.l.b16 %v356
    %v396 = vunpack.c.l.b16 %v357
    %v397 = vunpack.c.l.b16 %v358
    %v398 = vunpack.c.l.b16 %v359
    %v399 = vunpack.c.l.b16 %v360
    %v400 = vunpack.c.l.b16 %v361
    %v401 = vunpack.c.l.b16 %v362
    %v402 = vunpack.c.l.b16 %v363
    %v403 = vunpack.c.l.b16 %v364
    %v404 = vunpack.c.l.b16 %v365
    %v405 = vunpack.c.l.b16 %v366
    %v406 = vunpack.c.l.b16 %v367
    %v407 = vunpack.c.l.b16 %v368
    %v408 = vpack.c.b16 %v393, %v392
    %v409 = vpack.c.b16 %v395, %v394
    %v410 = vpack.c.b16 %v397, %v396
    %v411 = vpack.c.b16 %v399, %v398
    %v412 = vpack.c.b16 %v401, %v400
    %v413 = vpack.c.b16 %v403, %v402
    %v414 = vpack.c.b16 %v405, %v404
    %v415 = vpack.c.b16 %v407, %v406
    %424 = vmatprep.subr.bf16.mxu0 0
    %425 = vmatpush1.bf16.msra.mxu0 %v408
    %426 = vmatprep.subr.bf16.mxu0 0
    %427 = vmatpush1.bf16.msra.mxu0 %v409
    %428 = vmatprep.subr.bf16.mxu0 0
    %429 = vmatpush1.bf16.msra.mxu0 %v410
    %430 = vmatprep.subr.bf16.mxu0 0
    %431 = vmatpush1.bf16.msra.mxu0 %v411
    %432 = vmatprep.subr.bf16.mxu0 0
    %433 = vmatpush1.bf16.msra.mxu0 %v412
    %434 = vmatprep.subr.bf16.mxu0 0
    %435 = vmatpush1.bf16.msra.mxu0 %v413
    %436 = vmatprep.subr.bf16.mxu0 0
    %437 = vmatpush1.bf16.msra.mxu0 %v414
    %438 = vmatprep.subr.bf16.mxu0 0
    %439 = vmatpush1.bf16.msra.mxu0 %v415
    %440 = vmatprep.subr.bf16.mxu0 0
    %441 = vmatpush1.bf16.msra.mxu0 0
    %442 = vmatprep.subr.bf16.mxu0 0
    %443 = vmatpush1.bf16.msra.mxu0 0
    %444 = vmatprep.subr.bf16.mxu0 0
    %445 = vmatpush1.bf16.msra.mxu0 0
    %446 = vmatprep.subr.bf16.mxu0 0
    %447 = vmatpush1.bf16.msra.mxu0 0
    %448 = vmatprep.subr.bf16.mxu0 0
    %449 = vmatpush1.bf16.msra.mxu0 0
    %450 = vmatprep.subr.bf16.mxu0 0
    %451 = vmatpush1.bf16.msra.mxu0 0
    %452 = vmatprep.subr.bf16.mxu0 0
    %453 = vmatpush1.bf16.msra.mxu0 0
    %454 = vmatprep.subr.bf16.mxu0 0
    %455 = vmatpush1.bf16.msra.mxu0 0
    %456 = vmatprep.mubr.bf16.mxu0 0
    %457 = vmatmul.mubr.bf16.gmra.mrb[0].mxu0 %v351
    %v458 = vpop.f32.mrb[0].mxu0
    %v459 = vadd.f32 %v374, %v458
    %v460 = vpop.f32.mrb[0].mxu0
    %v461 = vpop.f32.mrb[0].mxu0
    %v462 = vadd.f32 %v374, %v461
    %v463 = vpop.f32.mrb[0].mxu0
    %464 = vdwg.mxu0
    %v465 = vld [vmem:[#allocation8] sm:$0xf]
    %v466 = vld [vmem:[#allocation8 + $0x4] sm:$0xf]
    %v467 = vld [vmem:[#allocation8 + $0x8] sm:$0xf]
    %v468 = vld [vmem:[#allocation8 + $0xc] sm:$0xf]
    %v469 = vld [vmem:[#allocation8 + $0x10] sm:$0xf]
    %v470 = vld [vmem:[#allocation8 + $0x14] sm:$0xf]
    %v471 = vld [vmem:[#allocation8 + $0x18] sm:$0xf]
    %v472 = vld [vmem:[#allocation8 + $0x1c] sm:$0xf]
    %v473 = vld [vmem:[#allocation8 + $0x20] sm:$0xf]
    %v474 = vld [vmem:[#allocation8 + $0x24] sm:$0xf]
    %v475 = vld [vmem:[#allocation8 + $0x28] sm:$0xf]
    %v476 = vld [vmem:[#allocation8 + $0x2c] sm:$0xf]
    %v477 = vld [vmem:[#allocation8 + $0x30] sm:$0xf]
    %v478 = vld [vmem:[#allocation8 + $0x34] sm:$0xf]
    %v479 = vld [vmem:[#allocation8 + $0x38] sm:$0xf]
    %v480 = vld [vmem:[#allocation8 + $0x3c] sm:$0xf]
    %v481 = vld [vmem:[%s6] sm:$0x1]
    %v483 = vlaneseq
    %v484 = vshrl.u32 %v483, 7
    %v485 = vsub.s32 0, %v484
    %v486 = vrot.slane %v481, %v485
    %v504 = vunpack.c.l.b16 %v465
    %v505 = vunpack.c.l.b16 %v466
    %v506 = vunpack.c.l.b16 %v467
    %v507 = vunpack.c.l.b16 %v468
    %v508 = vunpack.c.l.b16 %v469
    %v509 = vunpack.c.l.b16 %v470
    %v510 = vunpack.c.l.b16 %v471
    %v511 = vunpack.c.l.b16 %v472
    %v512 = vunpack.c.l.b16 %v473
    %v513 = vunpack.c.l.b16 %v474
    %v514 = vunpack.c.l.b16 %v475
    %v515 = vunpack.c.l.b16 %v476
    %v516 = vunpack.c.l.b16 %v477
    %v517 = vunpack.c.l.b16 %v478
    %v518 = vunpack.c.l.b16 %v479
    %v519 = vunpack.c.l.b16 %v480
    %v520 = vpack.c.b16 %v505, %v504
    %v521 = vpack.c.b16 %v507, %v506
    %v522 = vpack.c.b16 %v509, %v508
    %v523 = vpack.c.b16 %v511, %v510
    %v524 = vpack.c.b16 %v513, %v512
    %v525 = vpack.c.b16 %v515, %v514
    %v526 = vpack.c.b16 %v517, %v516
    %v527 = vpack.c.b16 %v519, %v518
    %536 = vmatprep.subr.bf16.mxu0 0
    %537 = vmatpush1.bf16.msra.mxu0 %v520
    %538 = vmatprep.subr.bf16.mxu0 0
    %539 = vmatpush1.bf16.msra.mxu0 %v521
    %540 = vmatprep.subr.bf16.mxu0 0
    %541 = vmatpush1.bf16.msra.mxu0 %v522
    %542 = vmatprep.subr.bf16.mxu0 0
    %543 = vmatpush1.bf16.msra.mxu0 %v523
    %544 = vmatprep.subr.bf16.mxu0 0
    %545 = vmatpush1.bf16.msra.mxu0 %v524
    %546 = vmatprep.subr.bf16.mxu0 0
    %547 = vmatpush1.bf16.msra.mxu0 %v525
    %548 = vmatprep.subr.bf16.mxu0 0
    %549 = vmatpush1.bf16.msra.mxu0 %v526
    %550 = vmatprep.subr.bf16.mxu0 0
    %551 = vmatpush1.bf16.msra.mxu0 %v527
    %552 = vmatprep.subr.bf16.mxu0 0
    %553 = vmatpush1.bf16.msra.mxu0 0
    %554 = vmatprep.subr.bf16.mxu0 0
    %555 = vmatpush1.bf16.msra.mxu0 0
    %556 = vmatprep.subr.bf16.mxu0 0
    %557 = vmatpush1.bf16.msra.mxu0 0
    %558 = vmatprep.subr.bf16.mxu0 0
    %559 = vmatpush1.bf16.msra.mxu0 0
    %560 = vmatprep.subr.bf16.mxu0 0
    %561 = vmatpush1.bf16.msra.mxu0 0
    %562 = vmatprep.subr.bf16.mxu0 0
    %563 = vmatpush1.bf16.msra.mxu0 0
    %564 = vmatprep.subr.bf16.mxu0 0
    %565 = vmatpush1.bf16.msra.mxu0 0
    %566 = vmatprep.subr.bf16.mxu0 0
    %567 = vmatpush1.bf16.msra.mxu0 0
    %568 = vmatprep.mubr.bf16.mxu0 0
    %569 = vmatmul.mubr.bf16.gmra.mrb[0].mxu0 %v352
    %v570 = vpop.f32.mrb[0].mxu0
    %v571 = vadd.f32 %v486, %v570
    %v572 = vpop.f32.mrb[0].mxu0
    %v573 = vpop.f32.mrb[0].mxu0
    %v574 = vadd.f32 %v486, %v573
    %v575 = vpop.f32.mrb[0].mxu0
    %576 = vdwg.mxu0
    %v577 = vmax.f32 %v459, -100.0
    %v578 = vmax.f32 %v462, -100.0
    %v579 = vmin.f32 %v577, 85.0
    %v580 = vmin.f32 %v578, 85.0
    %v581 = vmax.f32 %v571, -100.0
    %v582 = vmax.f32 %v574, -100.0
    %v583 = vmin.f32 %v581, 85.0
    %v584 = vmin.f32 %v582, 85.0
    %v585 = vtanh.pop %v583
    %v586 = vtanh.pop %v584
    %v587 = vld [vmem:[%s7] sm:$0xff]
    %v588 = vld [vmem:[%s7 + $0x8] sm:$0xff]
    %v589 = vmul.f32 %v585, 0.5
    %v590 = vmul.f32 %v586, 0.5
    %v591 = vmul.f32 %v589, 1.442695
    %v592 = vpow.pop %v591
    %v593 = vmul.f32 %v590, 1.442695
    %v594 = vpow.pop %v593
    %v595 = vmul.f32 %v587, %v592
    %v596 = vmul.f32 %v588, %v594
    %v597 = vadd.f32 %v579, %v595
    %v598 = vadd.f32 %v580, %v596
    %599 = vst [vmem:[#allocation10] sm:$0xff] %v579
    %600 = vst [vmem:[#allocation10 + $0x8] sm:$0xff] %v580
    %601 = vst [vmem:[#allocation11] sm:$0xff] %v585
    %602 = vst [vmem:[#allocation11 + $0x8] sm:$0xff] %v586
    %603 = vst [vmem:[#allocation13] sm:$0xff] %v597
    %604 = vst [vmem:[#allocation13 + $0x8] sm:$0xff] %v598
    // Predicated region
    $region50: #{gaussian_forward.1} parent=1 // pred_check
      _
    $region51: #{gaussian_forward.1} parent=1 // pred_check_branch
      %606 = sbr.rel (0) target = $region53
    $region52: #{gaussian_forward.1} parent=1 // pred_region
      %s608 = ssub.s32 256, 256
      %609 = vsyncadd [#allocation4], %s608
      %s610 = sshll.u32 [#allocation10], 4
      %s611 = int_to_ptr.vmem [resolvable:$true] %s610
      %616 = dma.vmem_to_hbm [thread:$0]  %s611, 256, %s8, [#allocation4], 128, 128, 8
    $region53: #{gaussian_forward.1} parent=1 // pred_fallthru
      _
    // Predicated region
    $region54: #{gaussian_forward.1} parent=1 // pred_check
      _
    $region55: #{gaussian_forward.1} parent=1 // pred_check_branch
      %618 = sbr.rel (0) target = $region57
    $region56: #{gaussian_forward.1} parent=1 // pred_region
      %s620 = ssub.s32 256, 256
      %621 = vsyncadd [#allocation12], %s620
      %s622 = sshll.u32 [#allocation11], 4
      %s623 = int_to_ptr.vmem [resolvable:$true] %s622
      %628 = dma.vmem_to_hbm [thread:$0]  %s623, 256, %s9, [#allocation12], 128, 128, 8
    $region57: #{gaussian_forward.1} parent=1 // pred_fallthru
      _
    // Predicated region
    $region58: #{gaussian_forward.1} parent=1 // pred_check
      _
    $region59: #{gaussian_forward.1} parent=1 // pred_check_branch
      %630 = sbr.rel (0) target = $region61
    $region60: #{gaussian_forward.1} parent=1 // pred_region
      %s632 = ssub.s32 256, 256
      %633 = vsyncadd [#allocation12], %s632
      %s634 = sshll.u32 [#allocation13], 4
      %s635 = int_to_ptr.vmem [resolvable:$true] %s634
      %640 = dma.vmem_to_hbm [thread:$0]  %s635, 256, %s10, [#allocation12], 128, 128, 8
    $region61: #{gaussian_forward.1} parent=1 // pred_fallthru
      _
    // Predicated region
    $region62: #{gaussian_forward.1} parent=1 // pred_check
      _
    $region63: #{gaussian_forward.1} parent=1 // pred_check_branch
      %642 = sbr.rel (0) target = $region65
    $region64: #{gaussian_forward.1} parent=1 // pred_region
      %643 = dma.done [#allocation4], 256
    $region65: #{gaussian_forward.1} parent=1 // pred_fallthru
      _
    // Predicated region
    $region66: #{gaussian_forward.1} parent=1 // pred_check
      _
    $region67: #{gaussian_forward.1} parent=1 // pred_check_branch
      %645 = sbr.rel (0) target = $region69
    $region68: #{gaussian_forward.1} parent=1 // pred_region
      %646 = dma.done [#allocation12], 256
    $region69: #{gaussian_forward.1} parent=1 // pred_fallthru
      _
    // Predicated region
    $region70: #{gaussian_forward.1} parent=1 // pred_check
      _
    $region71: #{gaussian_forward.1} parent=1 // pred_check_branch
      %648 = sbr.rel (0) target = $region73
    $region72: #{gaussian_forward.1} parent=1 // pred_region
      %649 = dma.done [#allocation12], 256
    $region73: #{gaussian_forward.1} parent=1 // pred_fallthru
      _
    %650 = vsyncpa [#allocation3], 1
    %651 = vsyncpa [#allocation6], 1
    %652 = vsyncpa [#allocation9], 1
    %653 = vsyncpa [#allocation4], 1
    %654 = vsyncpa [#allocation12], 1

</llo_original>
